<compile_context>
chip_gen: v7x
topology: tpu7x:2x2x1
jax: 0.10.0
libtpu: 0.0.40
codegen_flags: <defaults>
</compile_context>

<pallas_src>
import functools
import re

import jax
import jax.numpy as jnp
from jax import lax
from jax.experimental import pallas as pl
from jax.experimental.pallas import tpu as pltpu


def _round_up(x, m):
    return ((x + m - 1) // m) * m


def _tpu_generation():
    """Best-effort TPU generation number (5, 6, 7, ...) or None."""
    try:
        kind = jax.devices()[0].device_kind.lower()
    except Exception:
        return None
    m = re.search(r"v(\d+)", kind)
    return int(m.group(1)) if m else None


def _tpu_config():
    """Per-generation (tile_vmem_budget, vmem_limit_bytes, bf16_compute_ok).

    v5e/v6e: 128 MiB physical VMEM (16/32 MiB scoped default) -> grow tiles
    aggressively and raise the scoped limit to 64 MiB.  v7x: only 64 MiB per
    TensorCore -> moderate tile budget, 40 MiB limit.  bf16 VALU/EUP exist on
    v6e and later only (never compute in bf16 on v5e).
    """
    gen = _tpu_generation()
    if gen is None:
        return 8 * 1024 * 1024, 32 * 1024 * 1024, False
    if gen <= 5:
        return 24 * 1024 * 1024, 64 * 1024 * 1024, False
    if gen == 6:
        return 24 * 1024 * 1024, 64 * 1024 * 1024, True
    # v7x and later: 64 MiB VMEM per TensorCore.
    return 16 * 1024 * 1024, 40 * 1024 * 1024, True


def _pick_tile_n(n, c, in_dtype, compute_dtype, vmem_budget_bytes, row_cap=4096):
    """Rows per tile: big enough to amortize ~0.35 us/step grid overhead,
    small enough that everything live per step fits the per-gen VMEM budget."""
    n8 = _round_up(max(n, 1), 8)
    in_item = jnp.dtype(in_dtype).itemsize
    comp_item = jnp.dtype(compute_dtype).itemsize
    bytes_per_row = (
        c * (2 * in_item        # 2x double-buffered native logits tile
             + 3 * comp_item    # xm, exp(xm), masked-select temporaries
             + 4)               # int32 column iota
        + 2 * 128 * 4           # (tile_n,1) int32 target lane-pads to 128 lanes, 2 bufs
    )
    max_rows = max(8, (vmem_budget_bytes // max(bytes_per_row, 1)) // 8 * 8)
    return int(min(n8, row_cap, max_rows))


def _wsp_ce_partial_kernel(logits_ref, target_ref, out_ref, *,
                           n_rows, tile_n, compute_dtype):
    # logits_ref: (TILE_N, C) native dtype, VMEM
    # target_ref: (TILE_N, 1) int32, VMEM
    # out_ref   : (1, 8, 128) f32, VMEM  -- per-tile partial CE sum (lane-dense)
    i = pl.program_id(0)

    x = logits_ref[...]
    if x.dtype != compute_dtype:
        x = x.astype(compute_dtype)
    t = target_ref[...]                                          # (TILE_N, 1)
    tn, c = x.shape

    # numerically-stable pass: row max (XLU), shift (VPU), exp (EUP)
    m = jnp.max(x, axis=-1, keepdims=True)                       # (TILE_N, 1)
    xm = x - m                                                   # compute dtype
    ex = jnp.exp(xm)                                             # compute dtype

    # reductions always accumulate in f32 (bf16 sums would visibly diverge)
    sum_exp = jnp.sum(ex, axis=-1, keepdims=True, dtype=jnp.float32)

    # fused target pick on the already-shifted logits (pure VPU one-hot select;
    # no per-row dynamic gather, raw x not kept live)
    col = lax.broadcasted_iota(jnp.int32, (tn, c), 1)
    picked_shift = jnp.sum(jnp.where(col == t, xm, jnp.zeros_like(xm)),
                           axis=-1, keepdims=True, dtype=jnp.float32)

    # per-row CE = log(sum(exp(x-m))) - (x_t - m) == logsumexp(x) - x_t
    per_row = jnp.log(sum_exp) - picked_shift                    # (TILE_N, 1) f32

    # mask rows beyond the real batch (padded last tile reads garbage)
    row = lax.broadcasted_iota(jnp.int32, (tn, 1), 0) + i * tile_n
    per_row = jnp.where(row < n_rows, per_row, 0.0)

    tile_sum = jnp.sum(per_row)
    out_ref[...] = jnp.full(out_ref.shape, tile_sum, dtype=jnp.float32)


def wsp_loss(output, target, value, gamma=10.0, tile_n=None):
    """Pallas implementation of WSPLoss.forward(output, target, value)."""
    n, c = output.shape
    target2d = target.astype(jnp.int32).reshape(n, 1)

    tile_budget, vmem_limit, bf16_ok = _tpu_config()
    compute_dtype = (jnp.bfloat16
                     if (bf16_ok and output.dtype == jnp.bfloat16)
                     else jnp.float32)

    if tile_n is None:
        tile_n = _pick_tile_n(n, c, output.dtype, compute_dtype, tile_budget)
        # Megacore balance: the "parallel" batch axis is sharded across v7x's
        # 2 TensorCores -> make sure there are >= 2 grid steps when possible.
        if n > 8 and (n + tile_n - 1) // tile_n < 2:
            tile_n = _round_up((n + 1) // 2, 8)
    tile_n = int(_round_up(tile_n, 8))
    num_tiles = int(pl.cdiv(n, tile_n))

    kernel = functools.partial(_wsp_ce_partial_kernel, n_rows=n, tile_n=tile_n,
                               compute_dtype=compute_dtype)

    itemsize = jnp.dtype(output.dtype).itemsize
    partials = pl.pallas_call(
        kernel,
        out_shape=jax.ShapeDtypeStruct((num_tiles, 8, 128), jnp.float32),
        grid=(num_tiles,),
        in_specs=[
            pl.BlockSpec((tile_n, c), lambda i: (i, 0)),   # logits (native dtype)
            pl.BlockSpec((tile_n, 1), lambda i: (i, 0)),   # target indices
        ],
        out_specs=pl.BlockSpec((1, 8, 128), lambda i: (i, 0, 0)),
        compiler_params=pltpu.CompilerParams(
            dimension_semantics=("parallel",),             # megacore split on v7x
            vmem_limit_bytes=vmem_limit,
        ),
        cost_estimate=pl.CostEstimate(
            flops=6 * n * c,
            transcendentals=n * c + n,
            bytes_accessed=n * c * itemsize + n * 4 + num_tiles * 8 * 128 * 4,
        ),
    )(output, target2d)

    # tiny final reduction + scalar fuse in plain JAX
    ce = jnp.sum(partials[:, 0, 0]) / jnp.float32(n)
    return ce + jnp.asarray(value, dtype=jnp.float32) * jnp.float32(gamma)


def _reference_wsp_loss(output, target, value, gamma=10.0):
    # pure-JAX reference (matches F.cross_entropy with mean reduction)
    logp = jax.nn.log_softmax(output.astype(jnp.float32), axis=-1)
    nll = -jnp.take_along_axis(logp, target[:, None].astype(jnp.int32), axis=-1)
    return jnp.mean(nll) + jnp.float32(value) * jnp.float32(gamma)


if __name__ == "__main__":
    key = jax.random.PRNGKey(0)
    k1, k2, k3, k4, k5, k6 = jax.random.split(key, 6)
    gamma = 10.0

    # --- test 1: small f32 case (single tile, exact fit; f32 compute path) ---
    N1, C1 = 8, 8
    out1 = jax.random.normal(k1, (N1, C1), dtype=jnp.float32)
    tgt1 = jax.random.randint(k2, (N1,), 0, C1, dtype=jnp.int32)
    val1 = jax.random.uniform(k3, (), dtype=jnp.float32) * 0.1

    loss1 = jax.block_until_ready(wsp_loss(out1, tgt1, val1, gamma=gamma))
    ref1 = _reference_wsp_loss(out1, tgt1, val1, gamma=gamma)
    assert jnp.allclose(loss1, ref1, rtol=1e-4, atol=1e-4), (loss1, ref1)

    # --- test 2: bf16 logits, multiple tiles + padded last tile (masking).
    # On v6e/v7x this exercises the bf16 compute path, so compare with a
    # bf16-appropriate tolerance against the f32 reference.
    N2, C2 = 70, 16
    out2 = jax.random.normal(k4, (N2, C2), dtype=jnp.bfloat16)
    tgt2 = jax.random.randint(k5, (N2,), 0, C2, dtype=jnp.int32)
    val2 = jax.random.uniform(k6, (), dtype=jnp.float32) * 0.1

    loss2 = jax.block_until_ready(wsp_loss(out2, tgt2, val2, gamma=gamma, tile_n=32))
    ref2 = _reference_wsp_loss(out2, tgt2, val2, gamma=gamma)
    assert jnp.allclose(loss2, ref2, rtol=2e-2, atol=2e-2), (loss2, ref2)

    # --- test 3: auto tile selection on a larger batch (megacore >=2 tiles) ---
    N3, C3 = 4096, 128
    out3 = jax.random.normal(k1, (N3, C3), dtype=jnp.float32)
    tgt3 = jax.random.randint(k2, (N3,), 0, C3, dtype=jnp.int32)
    val3 = jnp.float32(0.05)

    loss3 = jax.block_until_ready(wsp_loss(out3, tgt3, val3, gamma=gamma))
    ref3 = _reference_wsp_loss(out3, tgt3, val3, gamma=gamma)
    assert jnp.allclose(loss3, ref3, rtol=1e-4, atol=1e-4), (loss3, ref3)

    print("KERNEL_OK")
</pallas_src>

<mosaic_0001>
module attributes {stable_mosaic.version = 11 : i64} {
  func.func @_wsp_ce_partial_kernel(%arg0: i32, %arg1: memref<8x8xf32, #tpu.memory_space<vmem>>, %arg2: memref<8x1xi32, #tpu.memory_space<vmem>>, %arg3: memref<1x8x128xf32, #tpu.memory_space<vmem>>) attributes {dimension_semantics = [#tpu.dimension_semantics<parallel>], iteration_bounds = array<i64: 1>, scalar_prefetch = 0 : i64, scratch_operands = 0 : i64, tpu.core_type = #tpu.core_type<tc>, window_params = [{transform_indices = @transform_0, window_bounds = array<i64: 8, 8>}, {transform_indices = @transform_1, window_bounds = array<i64: 8, 1>}, {transform_indices = @transform_2, window_bounds = array<i64: 1, 8, 128>}]} {
    %c0 = arith.constant 0 : index
    %c0_0 = arith.constant 0 : index
    %0 = vector.load %arg1[%c0, %c0_0] : memref<8x8xf32, #tpu.memory_space<vmem>>, vector<8x8xf32>
    %c0_1 = arith.constant 0 : index
    %c0_2 = arith.constant 0 : index
    %1 = vector.load %arg2[%c0_1, %c0_2] : memref<8x1xi32, #tpu.memory_space<vmem>>, vector<8x1xi32>
    %cst = arith.constant dense<0xFF800000> : vector<8xf32>
    %2 = vector.multi_reduction <maximumf>, %0, %cst [1] : vector<8x8xf32> to vector<8xf32>
    %3 = vector.shape_cast %2 : vector<8xf32> to vector<8x1xf32>
    %4 = vector.broadcast %3 : vector<8x1xf32> to vector<8x8xf32>
    %5 = arith.subf %0, %4 : vector<8x8xf32>
    %6 = math.exp %5 : vector<8x8xf32>
    %cst_3 = arith.constant dense<0.000000e+00> : vector<8xf32>
    %7 = vector.multi_reduction <add>, %6, %cst_3 [1] : vector<8x8xf32> to vector<8xf32>
    %8 = vector.shape_cast %7 : vector<8xf32> to vector<8x1xf32>
    %9 = tpu.iota {dimensions = array<i32: 1>} : vector<8x8xi32>
    %10 = vector.broadcast %1 : vector<8x1xi32> to vector<8x8xi32>
    %11 = arith.cmpi eq, %9, %10 : vector<8x8xi32>
    %cst_4 = arith.constant 0.000000e+00 : f32
    %12 = vector.broadcast %cst_4 : f32 to vector<8x8xf32>
    %13 = arith.select %11, %5, %12 : vector<8x8xi1>, vector<8x8xf32>
    %cst_5 = arith.constant dense<0.000000e+00> : vector<8xf32>
    %14 = vector.multi_reduction <add>, %13, %cst_5 [1] : vector<8x8xf32> to vector<8xf32>
    %15 = vector.shape_cast %14 : vector<8xf32> to vector<8x1xf32>
    %16 = math.log %8 : vector<8x1xf32>
    %17 = arith.subf %16, %15 : vector<8x1xf32>
    %18 = tpu.iota {dimensions = array<i32: 0>} : vector<8x1xi32>
    %c8_i32 = arith.constant 8 : i32
    %19 = arith.muli %arg0, %c8_i32 : i32
    %20 = vector.broadcast %19 : i32 to vector<8x1xi32>
    %21 = arith.addi %18, %20 : vector<8x1xi32>
    %c8_i32_6 = arith.constant 8 : i32
    %22 = vector.broadcast %c8_i32_6 : i32 to vector<8x1xi32>
    %23 = arith.cmpi slt, %21, %22 : vector<8x1xi32>
    %cst_7 = arith.constant 0.000000e+00 : f32
    %24 = vector.broadcast %cst_7 : f32 to vector<8x1xf32>
    %25 = arith.select %23, %17, %24 : vector<8x1xi1>, vector<8x1xf32>
    %26 = vector.shape_cast %25 : vector<8x1xf32> to vector<1x8x1xf32>
    %cst_8 = arith.constant dense<0.000000e+00> : vector<1xf32>
    %27 = vector.multi_reduction <add>, %26, %cst_8 [1, 2] : vector<1x8x1xf32> to vector<1xf32>
    %28 = vector.shape_cast %27 : vector<1xf32> to vector<1x1x1xf32>
    %29 = vector.extract %28[0, 0, 0] : f32 from vector<1x1x1xf32>
    %30 = vector.broadcast %29 : f32 to vector<1x8x128xf32>
    %c0_9 = arith.constant 0 : index
    %c0_10 = arith.constant 0 : index
    %c0_11 = arith.constant 0 : index
    %31 = vector.load %arg3[%c0_9, %c0_10, %c0_11] : memref<1x8x128xf32, #tpu.memory_space<vmem>>, vector<1x8x128xf32>
    tpu.vector_store %arg3[%c0_9, %c0_10, %c0_11], %30 {strides = array<i32>} : memref<1x8x128xf32, #tpu.memory_space<vmem>>, vector<1x8x128xf32>,
    return
  }
  func.func @transform_0(%arg0: i32) -> (i32, i32) {
    %c0_i32 = arith.constant 0 : i32
    %c0_i32_0 = arith.constant 0 : i32
    return %arg0, %c0_i32 : i32, i32
  }
  func.func @transform_1(%arg0: i32) -> (i32, i32) {
    %c0_i32 = arith.constant 0 : i32
    %c0_i32_0 = arith.constant 0 : i32
    return %arg0, %c0_i32 : i32, i32
  }
  func.func @transform_2(%arg0: i32) -> (i32, i32, i32) {
    %c0_i32 = arith.constant 0 : i32
    %c0_i32_0 = arith.constant 0 : i32
    %c0_i32_1 = arith.constant 0 : i32
    return %arg0, %c0_i32, %c0_i32_0 : i32, i32, i32
  }
}

</mosaic_0001>

<llo_original>
// kernel: tpu_custom_call.1
$region0: #{tpu_custom_call.1}
  #allocation0 [shape = 'u32[]', space=smem, size = 0x4, offset = 0x4, fixed_abs, tag = 'smem constant byte address 0x4 - core index']
  #allocation1 [shape = 'u32[144,128]{1,0:T(1,128)}', space=vmem, size = 0x12000, scoped, tag = 'internal scratch']
  %s0 = inlined_call_operand.vmem [shape: f32[8,8], index: 0, kind: input, shape index: {}]
  %s1 = inlined_call_operand.vmem [shape: s32[8,1], index: 1, kind: input, shape index: {}]
  %s2 = inlined_call_operand.hbm [shape: f32[1,8,128], index: 2, kind: output, shape index: {}]
  %s3 = sld [smem:[#allocation0]]
  $region18: #{tpu_custom_call.1} parent=0
    _
  %s5 = ssub.s32 1, %s3
  %s6 = scalar_select 0, %s5, %s3
  $region1: #{tpu_custom_call.1} parent=0
    #allocation2 [shape = 'u8[4096]{0}', space=vmem, size = 0x1000, scoped, tag = 'output window, operand 0, single buffered']
    #allocation3 [shape = 's32[1]{0}', space=sflag, size = 0x4, scoped, tag = 'scoped memory for tpu_custom_call.1']
    %7 = vsyncpa [#allocation3], 0
    // Predicated region
    $region2: #{tpu_custom_call.1} parent=1 // pred_check
      _
    $region3: #{tpu_custom_call.1} parent=1 // pred_check_branch
      %9 = sbr.rel (0) target = $region5
    $region4: #{tpu_custom_call.1} parent=1 // pred_region
      _
    $region5: #{tpu_custom_call.1} parent=1 // pred_fallthru
      _
    // Predicated region
    $region6: #{tpu_custom_call.1} parent=1 // pred_check
      _
    $region7: #{tpu_custom_call.1} parent=1 // pred_check_branch
      %11 = sbr.rel (0) target = $region9
    $region8: #{tpu_custom_call.1} parent=1 // pred_region
      _
    $region9: #{tpu_custom_call.1} parent=1 // pred_fallthru
      _
    %v12 = vld [vmem:[%s0] sm:$0xff]
    %v13 = vld [vmem:[%s1] sm:$0xff]
    %vm14 = vcmask 64512
    %v15 = vsel %vm14, %v12, -inf
    %16 = vmax.xlane.f32.xlu0 %v15
    %v17 = vpop.xlane.xlu0 %16
    %v18 = vsub.f32 %v12, %v17
    %v19 = vmul.f32 %v18, 1.442695
    %v20 = vpow.pop %v19
    %v21 = vsel %vm14, %v20, 0.0
    %22 = vadd.xlane.f32.xlu0 %v21
    %v23 = vpop.xlane.xlu0 %22
    %v24 = vlaneseq
    %v25 = vand.u32 %v24, 127
    %26 = vset.pattern.permute.xlu0 0
    %27 = vperm.xlu0 %26, %v13
    %v28 = vpop.permute.xlu0 %27
    %vm29 = vcmp.eq.s32.totalorder %v25, %v28
    %v30 = vsel %vm29, %v18, 0.0
    %v31 = vsel %vm14, %v30, 0.0
    %32 = vadd.xlane.f32.xlu0 %v31
    %v33 = vpop.xlane.xlu0 %32
    %v34 = vlog2.pop %v23
    %v35 = vmul.f32 %v34, 0.6931472
    %v36 = vsub.f32 %v35, %v33
    %v37 = vlaneseq
    %v38 = vshrl.u32 %v37, 7
    %s39 = smul.u32 0, 8
    %v40 = vstv %s39
    %v41 = vadd.s32 %v38, %v40
    %vm42 = vcmp.lt.s32.totalorder %v41, 8
    %v43 = vsel %vm42, %v36, 0.0
    %vm44 = vcmask 7168
    %v45 = vsel %vm44, %v43, 0.0
    %46 = vadd.xlane.f32.xlu0 %v45
    %v47 = vpop.xlane.xlu0 %46
    %v48 = vrot.slane %v47, 4
    %v49 = vadd.f32 %v47, %v48
    %v50 = vrot.slane %v49, 2
    %v51 = vadd.f32 %v49, %v50
    %v52 = vrot.slane %v51, 1
    %v53 = vadd.f32 %v51, %v52
    %s54 = vtos %v53
    %v55 = vstv %s54
    %56 = vst [vmem:[#allocation2] sm:$0xff] %v55
    // Predicated region
    $region10: #{tpu_custom_call.1} parent=1 // pred_check
      _
    $region11: #{tpu_custom_call.1} parent=1 // pred_check_branch
      %58 = sbr.rel (0) target = $region13
    $region12: #{tpu_custom_call.1} parent=1 // pred_region
      %s60 = ssub.s32 128, 128
      %61 = vsyncadd [#allocation3], %s60
      %s63 = sshll.u32 [#allocation2], 4
      %s64 = int_to_ptr.vmem [resolvable:$true] %s63
      %66 = dma.vmem_to_hbm [thread:$0]  %s64, 128, %s2, [#allocation3]
    $region13: #{tpu_custom_call.1} parent=1 // pred_fallthru
      _
    // Predicated region
    $region14: #{tpu_custom_call.1} parent=1 // pred_check
      _
    $region15: #{tpu_custom_call.1} parent=1 // pred_check_branch
      %68 = sbr.rel (0) target = $region17
    $region16: #{tpu_custom_call.1} parent=1 // pred_region
      %69 = dma.done [#allocation3], 128
    $region17: #{tpu_custom_call.1} parent=1 // pred_fallthru
      _
    %70 = vsyncpa [#allocation3], 1

</llo_original>
